<compile_context>
chip_gen: v5e
topology: v5e:2x2
jax: 0.10.0
libtpu: 0.0.40
codegen_flags: <defaults>
</compile_context>

<pallas_src>
import functools

import jax
import jax.numpy as jnp
from jax import lax
from jax.experimental import pallas as pl
from jax.experimental.pallas import tpu as pltpu

_LANES = 128
# (2048, 128) f32 = 1 MiB per stream per buffer.  Reduction path VMEM:
# 2 streams x 2 bufs x 1 MiB + 1 MiB accumulator ~= 5 MiB; 'none' path:
# 3 streams x 2 bufs x 1 MiB = 6 MiB.  Both fit the default scoped VMEM on
# every generation, so no vmem_limit_bytes override is needed.
_DEFAULT_BLOCK_ROWS = 2048


def _sublane_granule(dtype):
    """Row-block granularity for a dtype: 8 (4B), 16 (2B), 32 (1B)."""
    return max(8, 32 // max(1, jnp.dtype(dtype).itemsize))


def _focal_elements(x, t, *, alpha, gamma, binary_targets, approx_reciprocal):
    """Per-element focal loss.  x/t are float32 arrays of identical shape.

    Matches torch:
      bce = max(x,0) - x*t + log1p(exp(-|x|))     # BCE-with-logits, 'none'
      pt  = exp(-bce)
      out = alpha * (1 - pt)**gamma * bce
    """
    e = jnp.exp(-jnp.abs(x))                            # EUP op (reused below)
    bce = jnp.maximum(x, 0.0) - x * t + jnp.log1p(e)    # EUP op
    if binary_targets:
        # HARD {0,1} TARGETS ONLY (soft targets silently threshold at 0.5!).
        # pt = exp(-bce) reconstructed from the already-computed e = exp(-|x|):
        #   exp(x*t - max(x,0)) = 1 if sign(x) agrees with t, else e.
        # Single collapsed select (VALU diet vs. the old nested wheres).
        num = jnp.where(jnp.logical_xor(x >= 0.0, t >= 0.5), e, 1.0)
        denom = 1.0 + e
        if approx_reciprocal:
            # One EUP push in an otherwise-free slot (~2^-12 rel. error).
            pt = num * pl.reciprocal(denom, approx=True)
        else:
            pt = num / denom
    else:
        # Exact path: valid for arbitrary (soft) targets, one extra EUP op
        # but fewer VALU ops than the reconstruction above.
        pt = jnp.exp(-bce)
    one_m_pt = 1.0 - pt
    g = float(gamma)
    if g == int(g) and 0 <= int(g) <= 8:
        # Integer gamma: repeated multiply instead of pow (EUP log+exp);
        # also NaN-safe if one_m_pt ever dips slightly negative.
        gi = int(g)
        mod = jnp.ones_like(one_m_pt) if gi == 0 else one_m_pt
        for _ in range(max(gi - 1, 0)):
            mod = mod * one_m_pt
    else:
        mod = jnp.power(jnp.maximum(one_m_pt, 0.0), g)
    return alpha * mod * bce


def _focal_sum_kernel(x_ref, t_ref, out_ref, acc_ref, *,
                      alpha, gamma, binary_targets, approx_reciprocal,
                      rows, tm, inner, num_blocks, needs_mask):
    p = pl.program_id(0)   # core axis (size 1 unless a megacore split was asked for)
    i = pl.program_id(1)   # reduction axis

    @pl.when(i == 0)
    def _():
        acc_ref[...] = jnp.zeros_like(acc_ref)

    x = x_ref[...].astype(jnp.float32)
    t = t_ref[...].astype(jnp.float32)
    f_loss = _focal_elements(x, t, alpha=alpha, gamma=gamma,
                             binary_targets=binary_targets,
                             approx_reciprocal=approx_reciprocal)

    b = p * inner + i      # global (unclamped) row-block index
    if needs_mask:
        last = num_blocks - 1

        @pl.when(b < last)
        def _():
            acc_ref[...] += f_loss

        @pl.when(b >= last)
        def _():
            # Mask edge-block garbage rows (rows >= `rows`) and clamped
            # phantom steps.  Garbage may be NaN/Inf, but jnp.where never
            # propagates the unselected branch, so it is squashed to 0.
            grow = b * tm + lax.broadcasted_iota(jnp.int32, f_loss.shape, 0)
            acc_ref[...] += jnp.where(grow < rows, f_loss, 0.0)
    else:
        acc_ref[...] += f_loss

    @pl.when(i == inner - 1)
    def _():
        # Epilogue: fold the (tm,128) accumulator into an (8,128) partial
        # using 8 independent chains (breaks the old serial dependence).
        groups = tm // 8
        k = min(8, groups)
        parts = [acc_ref[pl.ds(r * 8, 8), :] for r in range(k)]
        for r in range(k, groups):
            parts[r % k] = parts[r % k] + acc_ref[pl.ds(r * 8, 8), :]
        total8 = parts[0]
        for prt in parts[1:]:
            total8 = total8 + prt
        out_ref[...] = total8


def _focal_none_kernel(x_ref, t_ref, o_ref, *, alpha, gamma, binary_targets,
                       approx_reciprocal):
    x = x_ref[...].astype(jnp.float32)
    t = t_ref[...].astype(jnp.float32)
    f = _focal_elements(x, t, alpha=alpha, gamma=gamma,
                        binary_targets=binary_targets,
                        approx_reciprocal=approx_reciprocal)
    o_ref[...] = f.astype(o_ref.dtype)


def focal_loss(inputs, targets, *, alpha=1.0, gamma=2.0, reduction="mean",
               block_rows=_DEFAULT_BLOCK_ROWS, binary_targets=False,
               approx_reciprocal=False, cores=1, out_dtype=None):
    """Pallas TPU FocalLoss.forward ('none' | 'mean' | 'sum').

    binary_targets=True enables a hard-{0,1}-target fast path (one fewer
    transcendental); it THRESHOLDS targets at 0.5 and must not be used with
    soft/label-smoothed targets.  The default (False) matches torch exactly
    for arbitrary targets.  approx_reciprocal only affects the fast path.
    cores=2 requests a v7x two-TensorCore split of the reduction grid.
    """
    if reduction not in ("none", "mean", "sum"):
        raise ValueError(f"unknown reduction: {reduction!r}")
    assert inputs.shape == targets.shape
    n = inputs.size

    # Pass dtypes through untouched (casts happen in VMEM inside the kernel);
    # bool targets are widened to the logit dtype for layout simplicity.
    if targets.dtype == jnp.bool_:
        targets = targets.astype(inputs.dtype)

    x_flat = inputs.reshape(-1)   # reshape of a contiguous array: no copy
    t_flat = targets.reshape(-1)

    def _elems_jax(xf, tf):       # tiny-tail / tiny-input fallback (plain JAX)
        return _focal_elements(xf.astype(jnp.float32), tf.astype(jnp.float32),
                               alpha=float(alpha), gamma=float(gamma),
                               binary_targets=binary_targets,
                               approx_reciprocal=False)

    rows = n // _LANES            # lane-aligned prefix processed by the kernel
    n_main = rows * _LANES

    # ---------------- reduction == 'none' ----------------
    if reduction == "none":
        odt = jnp.dtype(out_dtype) if out_dtype is not None else inputs.dtype
        gran = max(_sublane_granule(inputs.dtype),
                   _sublane_granule(targets.dtype),
                   _sublane_granule(odt))
        if rows < gran:
            # Too small for a kernel launch to win anything.
            return _elems_jax(x_flat, t_flat).astype(odt).reshape(inputs.shape)
        tm = min(int(block_rows), (rows // gran) * gran)
        tm = max(gran, (tm // gran) * gran)
        num_blocks = pl.cdiv(rows, tm)
        x2 = x_flat[:n_main].reshape(rows, _LANES)
        t2 = t_flat[:n_main].reshape(rows, _LANES)
        out = pl.pallas_call(
            functools.partial(_focal_none_kernel, alpha=float(alpha),
                              gamma=float(gamma), binary_targets=binary_targets,
                              approx_reciprocal=approx_reciprocal),
            out_shape=jax.ShapeDtypeStruct((rows, _LANES), odt),
            grid=(num_blocks,),
            in_specs=[pl.BlockSpec((tm, _LANES), lambda i: (i, 0))] * 2,
            out_specs=pl.BlockSpec((tm, _LANES), lambda i: (i, 0)),
            compiler_params=pltpu.CompilerParams(
                dimension_semantics=("parallel",)),
        )(x2, t2)
        out_flat = out.reshape(-1)
        if n_main != n:
            tail = _elems_jax(x_flat[n_main:], t_flat[n_main:]).astype(odt)
            out_flat = jnp.concatenate([out_flat, tail])
        return out_flat.reshape(inputs.shape)

    # ---------------- reduction == 'mean' / 'sum' ----------------
    gran = max(_sublane_granule(inputs.dtype), _sublane_granule(targets.dtype))
    if rows < gran:
        total = jnp.sum(_elems_jax(x_flat, t_flat))
    else:
        tm = min(int(block_rows), (rows // gran) * gran)
        tm = max(gran, (tm // gran) * gran)
        num_blocks = pl.cdiv(rows, tm)
        cores_eff = max(1, min(int(cores), num_blocks))
        inner = pl.cdiv(num_blocks, cores_eff)
        needs_mask = (rows % tm != 0) or (cores_eff * inner != num_blocks)

        def block_map(p, i):
            b = p * inner + i
            # Clamp phantom steps (cores*inner may overshoot num_blocks);
            # their contribution is masked to zero inside the kernel.
            return (jnp.minimum(b, num_blocks - 1), 0)

        in_spec = pl.BlockSpec((tm, _LANES), block_map)
        if cores_eff > 1:
            # TODO(synk): verify on a v7x profile that CORE_PARALLEL actually
            # engages both TensorCores; plain "parallel" does not shard.
            lead_sem = pltpu.CORE_PARALLEL
        else:
            lead_sem = "arbitrary"

        x2 = x_flat[:n_main].reshape(rows, _LANES)
        t2 = t_flat[:n_main].reshape(rows, _LANES)
        partials = pl.pallas_call(
            functools.partial(
                _focal_sum_kernel, alpha=float(alpha), gamma=float(gamma),
                binary_targets=binary_targets,
                approx_reciprocal=approx_reciprocal,
                rows=rows, tm=tm, inner=inner, num_blocks=num_blocks,
                needs_mask=needs_mask),
            out_shape=jax.ShapeDtypeStruct((cores_eff * 8, _LANES), jnp.float32),
            grid_spec=pltpu.PrefetchScalarGridSpec(
                num_scalar_prefetch=0,
                grid=(cores_eff, inner),
                in_specs=[in_spec, in_spec],
                out_specs=pl.BlockSpec((8, _LANES), lambda p, i: (p, 0)),
                scratch_shapes=[pltpu.VMEM((tm, _LANES), jnp.float32)],
            ),
            compiler_params=pltpu.CompilerParams(
                dimension_semantics=(lead_sem, "arbitrary")),
        )(x2, t2)
        total = jnp.sum(partials)
        if n_main != n:
            total = total + jnp.sum(_elems_jax(x_flat[n_main:], t_flat[n_main:]))

    if reduction == "mean":
        return total / jnp.float32(n)
    return total


def _focal_loss_ref(inputs, targets, alpha=1.0, gamma=2.0):
    """Pure-JAX reference: exact torch FocalLoss formula, reduction='none'."""
    x = inputs.astype(jnp.float32)
    t = targets.astype(jnp.float32)
    bce = jnp.maximum(x, 0.0) - x * t + jnp.log1p(jnp.exp(-jnp.abs(x)))
    pt = jnp.exp(-bce)
    return alpha * (1.0 - pt) ** gamma * bce


if __name__ == "__main__":
    key = jax.random.PRNGKey(0)
    k1, k2, k3, k4 = jax.random.split(key, 4)

    # NCHW logits and {0,1} targets, as the PyTorch module would receive.
    inputs = jax.random.normal(k1, (2, 4, 16, 16), dtype=jnp.float32)
    targets = jax.random.bernoulli(k2, p=0.5, shape=(2, 4, 16, 16)).astype(
        jnp.float32)

    ref_none = _focal_loss_ref(inputs, targets, alpha=1.0, gamma=2.0)

    # Default (exact, soft-target-safe) path.
    out_mean = jax.block_until_ready(focal_loss(inputs, targets, reduction="mean"))
    out_sum = jax.block_until_ready(focal_loss(inputs, targets, reduction="sum"))
    out_none = jax.block_until_ready(focal_loss(inputs, targets, reduction="none"))
    assert jnp.allclose(out_mean, ref_none.mean(), rtol=1e-5, atol=1e-5), (
        out_mean, ref_none.mean())
    assert jnp.allclose(out_sum, ref_none.sum(), rtol=1e-5, atol=1e-3), (
        out_sum, ref_none.sum())
    assert jnp.allclose(out_none, ref_none, rtol=1e-5, atol=1e-5), (
        "elementwise ('none') mismatch")

    # Hard-{0,1}-target fast path (exact divide).
    out_mean_b = jax.block_until_ready(
        focal_loss(inputs, targets, reduction="mean", binary_targets=True))
    out_none_b = jax.block_until_ready(
        focal_loss(inputs, targets, reduction="none", binary_targets=True))
    assert jnp.allclose(out_mean_b, ref_none.mean(), rtol=1e-5, atol=1e-5)
    assert jnp.allclose(out_none_b, ref_none, rtol=1e-5, atol=1e-5)

    # Hard-target path with approximate reciprocal (EUP slot; looser tol).
    out_mean_a = jax.block_until_ready(
        focal_loss(inputs, targets, reduction="mean", binary_targets=True,
                   approx_reciprocal=True))
    assert jnp.allclose(out_mean_a, ref_none.mean(), rtol=1e-2, atol=1e-4)

    # Unaligned size: exercises the edge-block row mask + JAX ragged tail
    # (no jnp.pad input copy).
    xu = jax.random.normal(k3, (2000,), dtype=jnp.float32)
    tu = jax.random.bernoulli(k4, p=0.3, shape=(2000,)).astype(jnp.float32)
    ref_u = _focal_loss_ref(xu, tu, alpha=1.0, gamma=2.0)
    out_u_sum = jax.block_until_ready(focal_loss(xu, tu, reduction="sum"))
    out_u_none = jax.block_until_ready(focal_loss(xu, tu, reduction="none"))
    assert jnp.allclose(out_u_sum, ref_u.sum(), rtol=1e-5, atol=1e-3)
    assert jnp.allclose(out_u_none, ref_u, rtol=1e-5, atol=1e-5)

    print("KERNEL_OK")
</pallas_src>

<mosaic_0001>
module attributes {stable_mosaic.version = 11 : i64} {
  func.func @_focal_sum_kernel(%arg0: i32, %arg1: i32, %arg2: memref<16x128xf32, #tpu.memory_space<vmem>>, %arg3: memref<16x128xf32, #tpu.memory_space<vmem>>, %arg4: memref<8x128xf32, #tpu.memory_space<vmem>>, %arg5: memref<16x128xf32, #tpu.memory_space<vmem>>) attributes {dimension_semantics = [#tpu.dimension_semantics<arbitrary>, #tpu.dimension_semantics<arbitrary>], iteration_bounds = array<i64: 1, 1>, scalar_prefetch = 0 : i64, scratch_operands = 1 : i64, tpu.core_type = #tpu.core_type<tc>, window_params = [{transform_indices = @transform_0, window_bounds = array<i64: 16, 128>}, {transform_indices = @transform_1, window_bounds = array<i64: 16, 128>}, {transform_indices = @transform_2, window_bounds = array<i64: 8, 128>}]} {
    %c0_i32 = arith.constant 0 : i32
    %0 = arith.cmpi eq, %arg1, %c0_i32 : i32
    %1 = arith.extui %0 : i1 to i32
    %c0_i32_0 = arith.constant 0 : i32
    %2 = arith.cmpi ne, %1, %c0_i32_0 : i32
    scf.if %2 {
      %cst_14 = arith.constant 0.000000e+00 : f32
      %30 = vector.broadcast %cst_14 : f32 to vector<16x128xf32>
      %c0_15 = arith.constant 0 : index
      %c0_16 = arith.constant 0 : index
      %31 = vector.load %arg5[%c0_15, %c0_16] : memref<16x128xf32, #tpu.memory_space<vmem>>, vector<16x128xf32>
      tpu.vector_store %arg5[%c0_15, %c0_16], %30 {strides = array<i32>} : memref<16x128xf32, #tpu.memory_space<vmem>>, vector<16x128xf32>,
    } else {
    }
    %c0 = arith.constant 0 : index
    %c0_1 = arith.constant 0 : index
    %3 = vector.load %arg2[%c0, %c0_1] : memref<16x128xf32, #tpu.memory_space<vmem>>, vector<16x128xf32>
    %c0_2 = arith.constant 0 : index
    %c0_3 = arith.constant 0 : index
    %4 = vector.load %arg3[%c0_2, %c0_3] : memref<16x128xf32, #tpu.memory_space<vmem>>, vector<16x128xf32>
    %5 = math.absf %3 : vector<16x128xf32>
    %cst = arith.constant 0.000000e+00 : f32
    %6 = vector.broadcast %cst : f32 to vector<16x128xf32>
    %7 = arith.subf %6, %5 : vector<16x128xf32>
    %8 = math.exp %7 : vector<16x128xf32>
    %cst_4 = arith.constant 0.000000e+00 : f32
    %9 = vector.broadcast %cst_4 : f32 to vector<16x128xf32>
    %10 = arith.maximumf %3, %9 : vector<16x128xf32>
    %11 = arith.mulf %3, %4 : vector<16x128xf32>
    %12 = arith.subf %10, %11 : vector<16x128xf32>
    %13 = math.log1p %8 : vector<16x128xf32>
    %14 = arith.addf %12, %13 : vector<16x128xf32>
    %cst_5 = arith.constant 0.000000e+00 : f32
    %15 = vector.broadcast %cst_5 : f32 to vector<16x128xf32>
    %16 = arith.subf %15, %14 : vector<16x128xf32>
    %17 = math.exp %16 : vector<16x128xf32>
    %cst_6 = arith.constant 1.000000e+00 : f32
    %18 = vector.broadcast %cst_6 : f32 to vector<16x128xf32>
    %19 = arith.subf %18, %17 : vector<16x128xf32>
    %20 = arith.mulf %19, %19 : vector<16x128xf32>
    %cst_7 = arith.constant 1.000000e+00 : f32
    %21 = vector.broadcast %cst_7 : f32 to vector<16x128xf32>
    %22 = arith.mulf %21, %20 : vector<16x128xf32>
    %23 = arith.mulf %22, %14 : vector<16x128xf32>
    %c0_8 = arith.constant 0 : index
    %c0_9 = arith.constant 0 : index
    %24 = vector.load %arg5[%c0_8, %c0_9] : memref<16x128xf32, #tpu.memory_space<vmem>>, vector<16x128xf32>
    %25 = arith.addf %24, %23 : vector<16x128xf32>
    %c0_10 = arith.constant 0 : index
    %c0_11 = arith.constant 0 : index
    %26 = vector.load %arg5[%c0_10, %c0_11] : memref<16x128xf32, #tpu.memory_space<vmem>>, vector<16x128xf32>
    tpu.vector_store %arg5[%c0_10, %c0_11], %25 {strides = array<i32>} : memref<16x128xf32, #tpu.memory_space<vmem>>, vector<16x128xf32>,
    %c0_i32_12 = arith.constant 0 : i32
    %27 = arith.cmpi eq, %arg1, %c0_i32_12 : i32
    %28 = arith.extui %27 : i1 to i32
    %c0_i32_13 = arith.constant 0 : i32
    %29 = arith.cmpi ne, %28, %c0_i32_13 : i32
    scf.if %29 {
      %c0_14 = arith.constant 0 : index
      %c0_15 = arith.constant 0 : index
      %30 = vector.load %arg5[%c0_14, %c0_15] : memref<16x128xf32, #tpu.memory_space<vmem>>, vector<8x128xf32>
      %c8 = arith.constant 8 : index
      %c0_16 = arith.constant 0 : index
      %31 = vector.load %arg5[%c8, %c0_16] : memref<16x128xf32, #tpu.memory_space<vmem>>, vector<8x128xf32>
      %32 = arith.addf %30, %31 : vector<8x128xf32>
      %c0_17 = arith.constant 0 : index
      %c0_18 = arith.constant 0 : index
      %33 = vector.load %arg4[%c0_17, %c0_18] : memref<8x128xf32, #tpu.memory_space<vmem>>, vector<8x128xf32>
      tpu.vector_store %arg4[%c0_17, %c0_18], %32 {strides = array<i32>} : memref<8x128xf32, #tpu.memory_space<vmem>>, vector<8x128xf32>,
    } else {
    }
    return
  }
  func.func @transform_0(%arg0: i32, %arg1: i32) -> (i32, i32) {
    %c1_i32 = arith.constant 1 : i32
    %0 = arith.muli %arg0, %c1_i32 : i32
    %1 = arith.addi %0, %arg1 : i32
    %c0_i32 = arith.constant 0 : i32
    %2 = arith.minsi %1, %c0_i32 : i32
    %c0_i32_0 = arith.constant 0 : i32
    %c0_i32_1 = arith.constant 0 : i32
    return %2, %c0_i32_0 : i32, i32
  }
  func.func @transform_1(%arg0: i32, %arg1: i32) -> (i32, i32) {
    %c1_i32 = arith.constant 1 : i32
    %0 = arith.muli %arg0, %c1_i32 : i32
    %1 = arith.addi %0, %arg1 : i32
    %c0_i32 = arith.constant 0 : i32
    %2 = arith.minsi %1, %c0_i32 : i32
    %c0_i32_0 = arith.constant 0 : i32
    %c0_i32_1 = arith.constant 0 : i32
    return %2, %c0_i32_0 : i32, i32
  }
  func.func @transform_2(%arg0: i32, %arg1: i32) -> (i32, i32) {
    %c0_i32 = arith.constant 0 : i32
    %c0_i32_0 = arith.constant 0 : i32
    return %arg0, %c0_i32 : i32, i32
  }
}

</mosaic_0001>

<llo_original>
// kernel: tpu_custom_call.1
$region0: #{tpu_custom_call.1}
  #allocation0 [shape = 'u32[]', space=smem, size = 0x4, offset = 0x4, fixed_abs, tag = 'smem constant byte address 0x4 - core index']
  #allocation1 [shape = 'u32[72,128]{1,0:T(1,128)}', space=vmem, size = 0x9000, scoped, tag = 'internal scratch']
  #allocation2 [shape = 'f32[16,128]{1,0:T(8,128)}', space=vmem, size = 0x2000, scoped, tag = 'scratch operand']
  %s0 = inlined_call_operand.hbm [shape: f32[16,128], index: 0, kind: input, shape index: {}]
  %s1 = inlined_call_operand.hbm [shape: f32[16,128], index: 1, kind: input, shape index: {}]
  %s2 = inlined_call_operand.hbm [shape: f32[8,128], index: 2, kind: output, shape index: {}]
  %s3 = sld [smem:[#allocation0]]
  $region34: #{tpu_custom_call.1} parent=0
    _
  %s5 = ssub.s32 1, %s3
  %s6 = scalar_select 0, %s5, %s3
  $region1: #{tpu_custom_call.1} parent=0
    #allocation3 [shape = 'u8[8192]{0}', space=vmem, size = 0x2000, scoped, tag = 'input window, operand 0, single buffered']
    #allocation4 [shape = 's32[1]{0}', space=sflag, size = 0x4, scoped, tag = 'scoped memory for tpu_custom_call.1']
    #allocation5 [shape = 's32[1]{0}', space=sflag, size = 0x4, scoped, tag = 'scoped memory for tpu_custom_call.1']
    #allocation6 [shape = 'u8[8192]{0}', space=vmem, size = 0x2000, scoped, tag = 'input window, operand 1, single buffered']
    #allocation7 [shape = 's32[1]{0}', space=sflag, size = 0x4, scoped, tag = 'scoped memory for tpu_custom_call.1']
    #allocation8 [shape = 'u8[4096]{0}', space=vmem, size = 0x1000, scoped, tag = 'output window, operand 0, single buffered']
    %7 = vsyncpa [#allocation4], 0
    %8 = vsyncpa [#allocation7], 0
    %9 = vsyncpa [#allocation5], 0
    // Predicated region
    $region2: #{tpu_custom_call.1} parent=1 // pred_check
      _
    $region3: #{tpu_custom_call.1} parent=1 // pred_check_branch
      %11 = sbr.rel (0) target = $region5
    $region4: #{tpu_custom_call.1} parent=1 // pred_region
      %s12 = sadd.s32 0, 0
      %p13 = scmp.lt.s32.totalorder %s12, 0
      %s14 = scalar_select %p13, %s12, 0
      %s15 = smul.u32 2, %s14
      %17 = vsyncadd [#allocation4], 0
      %s18 = smul.addr %s15, 8
      %s19 = scalar_lea.hbm %s0, %s18
      %s20 = sshll.u32 %s19, 4
      %s21 = int_to_ptr.hbm [resolvable:$true] %s20
      %s22 = sshll.u32 [#allocation3], 4
      %s23 = int_to_ptr.vmem [resolvable:$true] %s22
      %28 = dma.hbm_to_vmem [thread:$0]  %s21, 256, %s23, [#allocation4], 128, 128, 8
    $region5: #{tpu_custom_call.1} parent=1 // pred_fallthru
      _
    // Predicated region
    $region6: #{tpu_custom_call.1} parent=1 // pred_check
      _
    $region7: #{tpu_custom_call.1} parent=1 // pred_check_branch
      %30 = sbr.rel (0) target = $region9
    $region8: #{tpu_custom_call.1} parent=1 // pred_region
      %s31 = sadd.s32 0, 0
      %p32 = scmp.lt.s32.totalorder %s31, 0
      %s33 = scalar_select %p32, %s31, 0
      %s34 = smul.u32 2, %s33
      %36 = vsyncadd [#allocation7], 0
      %s37 = smul.addr %s34, 8
      %s38 = scalar_lea.hbm %s1, %s37
      %s39 = sshll.u32 %s38, 4
      %s40 = int_to_ptr.hbm [resolvable:$true] %s39
      %s41 = sshll.u32 [#allocation6], 4
      %s42 = int_to_ptr.vmem [resolvable:$true] %s41
      %47 = dma.hbm_to_vmem [thread:$0]  %s40, 256, %s42, [#allocation7], 128, 128, 8
    $region9: #{tpu_custom_call.1} parent=1 // pred_fallthru
      _
    // Predicated region
    $region10: #{tpu_custom_call.1} parent=1 // pred_check
      _
    $region11: #{tpu_custom_call.1} parent=1 // pred_check_branch
      %49 = sbr.rel (0) target = $region13
    $region12: #{tpu_custom_call.1} parent=1 // pred_region
      %51 = dma.done [#allocation4], 256
    $region13: #{tpu_custom_call.1} parent=1 // pred_fallthru
      _
    // Predicated region
    $region14: #{tpu_custom_call.1} parent=1 // pred_check
      _
    $region15: #{tpu_custom_call.1} parent=1 // pred_check_branch
      %53 = sbr.rel (0) target = $region17
    $region16: #{tpu_custom_call.1} parent=1 // pred_region
      %55 = dma.done [#allocation7], 256
    $region17: #{tpu_custom_call.1} parent=1 // pred_fallthru
      _
    %s56 = sadd.s32 0, 0
    %p57 = scmp.lt.s32.totalorder %s56, 0
    %s58 = scalar_select %p57, %s56, 0
    %s59 = smul.u32 2, %s58
    %s60 = sadd.s32 0, 0
    %p61 = scmp.lt.s32.totalorder %s60, 0
    %s62 = scalar_select %p61, %s60, 0
    %s63 = smul.u32 2, %s62
    %p64 = scmp.eq.s32.totalorder 0, 0
    // Predicated region
    $region18: #{tpu_custom_call.1} parent=1 // pred_check
      %p65 = pneg %p64
    $region19: #{tpu_custom_call.1} parent=1 // pred_check_branch
      %67 = sbr.rel (%p65) target = $region21
    $region20: #{tpu_custom_call.1} parent=1 // pred_region
      %68 = vst [vmem:[#allocation2] sm:$0xff] 0.0
      %69 = vst [vmem:[#allocation2 + $0x8] sm:$0xff] 0.0
    $region21: #{tpu_custom_call.1} parent=1 // pred_fallthru
      _
    %v70 = vld [vmem:[#allocation3] sm:$0xff]
    %v71 = vld [vmem:[#allocation3 + $0x8] sm:$0xff]
    %v72 = vld [vmem:[#allocation6] sm:$0xff]
    %v73 = vld [vmem:[#allocation6 + $0x8] sm:$0xff]
    %v74 = vand.u32 2147483647, %v70
    %v75 = vand.u32 2147483647, %v71
    %v76 = vsub.f32 0.0, %v74
    %v77 = vsub.f32 0.0, %v75
    %v78 = vmul.f32 %v76, 1.442695
    %v79 = vpow.pop %v78
    %v80 = vmul.f32 %v77, 1.442695
    %v81 = vpow.pop %v80
    %v82 = vmax.f32 %v70, 0.0
    %v83 = vmax.f32 %v71, 0.0
    %v84 = vmul.f32 %v70, %v72
    %v85 = vmul.f32 %v71, %v73
    %v86 = vsub.f32 %v82, %v84
    %v87 = vsub.f32 %v83, %v85
    %v88 = vadd.f32 %v79, 1.0
    %v89 = vlog2.pop %v88
    %v90 = vmul.f32 %v89, 0.6931472
    %v91 = vmul.f32 -0.5, %v79
    %v92 = vadd.f32 %v91, 1.0
    %v93 = vmul.f32 %v92, %v79
    %v94 = vand.u32 2147483647, %v79
    %vm95 = vcmp.lt.f32.partialorder %v94, 0.0004427343
    %v96 = vsel %vm95, %v93, %v90
    %v97 = vadd.f32 %v81, 1.0
    %v98 = vlog2.pop %v97
    %v99 = vmul.f32 %v98, 0.6931472
    %v100 = vmul.f32 -0.5, %v81
    %v101 = vadd.f32 %v100, 1.0
    %v102 = vmul.f32 %v101, %v81
    %v103 = vand.u32 2147483647, %v81
    %vm104 = vcmp.lt.f32.partialorder %v103, 0.0004427343
    %v105 = vsel %vm104, %v102, %v99
    %v106 = vadd.f32 %v86, %v96
    %v107 = vadd.f32 %v87, %v105
    %v108 = vsub.f32 0.0, %v106
    %v109 = vsub.f32 0.0, %v107
    %v110 = vmul.f32 %v108, 1.442695
    %v111 = vpow.pop %v110
    %v112 = vmul.f32 %v109, 1.442695
    %v113 = vpow.pop %v112
    %v114 = vsub.f32 1.0, %v111
    %v115 = vsub.f32 1.0, %v113
    %v116 = vmul.f32 %v114, %v114
    %v117 = vmul.f32 %v115, %v115
    %v118 = vmul.f32 %v116, %v106
    %v119 = vmul.f32 %v117, %v107
    %v120 = vld [vmem:[#allocation2] sm:$0xff]
    %v121 = vld [vmem:[#allocation2 + $0x8] sm:$0xff]
    %v122 = vadd.f32 %v120, %v118
    %v123 = vadd.f32 %v121, %v119
    %124 = vst [vmem:[#allocation2] sm:$0xff] %v122
    %125 = vst [vmem:[#allocation2 + $0x8] sm:$0xff] %v123
    // Predicated region
    $region22: #{tpu_custom_call.1} parent=1 // pred_check
      %p126 = pneg %p64
    $region23: #{tpu_custom_call.1} parent=1 // pred_check_branch
      %128 = sbr.rel (%p126) target = $region25
    $region24: #{tpu_custom_call.1} parent=1 // pred_region
      %v129 = vld [vmem:[#allocation2] sm:$0xff]
      %v130 = vld [vmem:[#allocation2 + $0x8] sm:$0xff]
      %v131 = vadd.f32 %v129, %v130
      %132 = vst [vmem:[#allocation8] sm:$0xff] %v131
    $region25: #{tpu_custom_call.1} parent=1 // pred_fallthru
      _
    // Predicated region
    $region26: #{tpu_custom_call.1} parent=1 // pred_check
      _
    $region27: #{tpu_custom_call.1} parent=1 // pred_check_branch
      %134 = sbr.rel (0) target = $region29
    $region28: #{tpu_custom_call.1} parent=1 // pred_region
      %136 = vsyncadd [#allocation5], 0
      %s138 = sshll.u32 [#allocation8], 4
      %s139 = int_to_ptr.vmem [resolvable:$true] %s138
      %s140 = sshll.u32 %s2, 4
      %s141 = int_to_ptr.hbm [resolvable:$true] %s140
      %143 = dma.vmem_to_hbm [thread:$0]  %s139, 128, %s141, [#allocation5]
    $region29: #{tpu_custom_call.1} parent=1 // pred_fallthru
      _
    // Predicated region
    $region30: #{tpu_custom_call.1} parent=1 // pred_check
      _
    $region31: #{tpu_custom_call.1} parent=1 // pred_check_branch
      %145 = sbr.rel (0) target = $region33
    $region32: #{tpu_custom_call.1} parent=1 // pred_region
      %147 = dma.done [#allocation5], 128
    $region33: #{tpu_custom_call.1} parent=1 // pred_fallthru
      _
    %148 = vsyncpa [#allocation4], 1
    %149 = vsyncpa [#allocation7], 1
    %150 = vsyncpa [#allocation5], 1

</llo_original>
